<compile_context>
chip_gen: v6e
topology: v6e:2x2x1
jax: 0.10.0
libtpu: 0.0.40
codegen_flags: <defaults>
</compile_context>

<pallas_src>
import functools

import jax
import jax.numpy as jnp
from jax.experimental import pallas as pl
from jax.experimental.pallas import tpu as pltpu


_SQRT_2_OVER_PI = 0.7978845608028654          # sqrt(2/pi)
_GELU_C1 = _SQRT_2_OVER_PI * 0.044715         # folded constant


def _ffn_kernel(x_ref, w1_ref, b1_ref, w2_ref, b2_ref, o_ref):
    h_idx = pl.program_id(1)

    @pl.when(h_idx == 0)
    def _():
        o_ref[...] = jnp.zeros_like(o_ref)

    # First linear (one hidden slab): bf16 x @ bf16 w1 -> f32, + b1 (f32).
    x_bf = x_ref[...].astype(jnp.bfloat16)
    h = jnp.dot(x_bf, w1_ref[...], preferred_element_type=jnp.float32)
    h = h + b1_ref[...]

    # GELU, tanh approximation (matches the PyTorch module), all f32.
    c0 = jnp.float32(_SQRT_2_OVER_PI)
    c1 = jnp.float32(_GELU_C1)
    h2 = h * h
    inner = h * (c0 + c1 * h2)                 # == c0*(h + 0.044715*h^3)
    g = 0.5 * h * (1.0 + jnp.tanh(inner))

    # Second linear: accumulate this hidden slab directly into the resident
    # f32 output block.
    o_ref[...] += jnp.dot(g.astype(w2_ref.dtype), w2_ref[...],
                          preferred_element_type=jnp.float32)

    @pl.when(h_idx == pl.num_programs(1) - 1)
    def _():
        o_ref[...] += b2_ref[...]


def _round_up(a, b):
    return ((a + b - 1) // b) * b


def _pick_hidden_tile(H, th):
    """Largest hidden tile <= th that divides H and is lane-aligned (x128)."""
    th = min(th, H)
    if H % th == 0 and (th % 128 == 0 or th == H):
        return th
    t = (th // 128) * 128
    while t >= 128:
        if H % t == 0:
            return t
        t -= 128
    return H  # fall back to a single full-H block


def _vmem_capacity_bytes():
    try:
        cap = getattr(pltpu.get_tpu_info(), "vmem_capacity_bytes", None)
        if cap:
            return int(cap)
    except Exception:
        pass
    return 64 << 20  # conservative (v7x per-TC)


def _vmem_needed(tm, th, D):
    """Exact double-buffered footprint of the pipeline operands (bytes)."""
    bf, f32 = 2, 4
    return (2 * tm * D * f32        # x tile (f32 in VMEM, cast in kernel)
            + 2 * D * th * bf       # w1 hidden slab (bf16)
            + 2 * 8 * th * f32      # b1 slab (sublane-padded)
            + 2 * th * D * bf       # w2 hidden slab (bf16)
            + 2 * 8 * D * f32       # b2
            + 2 * tm * D * f32)     # resident f32 output tile (accumulator)


def _fit_tiles(tm, th, D, H, budget):
    """Shrink (tm, th) until the double-buffered operands fit the budget."""
    while _vmem_needed(tm, th, D) > budget:
        if tm > 256:
            tm = _round_up(tm // 2, 8)
        elif th > 128 and _pick_hidden_tile(H, th // 2) < th:
            th = _pick_hidden_tile(H, th // 2)
        elif tm > 8:
            tm = _round_up(tm // 2, 8)
        else:
            break
    return tm, th


@functools.partial(jax.jit, static_argnames=("tm", "th"))
def feed_forward(x, w1, b1, w2, b2, *, tm=None, th=None):
    """x: (B, S, D); w1: (D, 4D); b1: (1, 4D); w2: (4D, D); b2: (1, D).

    Weights may be passed pre-cast to bf16 (recommended; no per-call cast then).
    """
    B, S, D = x.shape
    H = w1.shape[1]
    M = B * S

    # --- generation-aware tile / VMEM budget selection (all trace-time) -----
    cap = _vmem_capacity_bytes()
    ceiling = max(cap - (8 << 20), 32 << 20)       # headroom for compiler scratch
    if tm is None:
        tm = 1024 if ceiling >= (96 << 20) else 512   # 128 MiB parts vs v7x
    if th is None:
        th = 512

    tm = _round_up(min(tm, _round_up(M, 8)), 8)
    th = _pick_hidden_tile(H, th)

    # Give the "parallel" M axis at least 2 tiles (v7x dual-TC / megacore).
    if M > 8 and _round_up(M, tm) // tm < 2:
        tm = _round_up((M + 1) // 2, 8)

    tm, th = _fit_tiles(tm, th, D, H, ceiling - (2 << 20))
    M_pad = _round_up(M, tm)

    # --- operands -----------------------------------------------------------
    x2d = x.reshape(M, D)
    if M_pad != M:
        x2d = jnp.pad(x2d, ((0, M_pad - M), (0, 0)))

    # Weights: use as-is if already bf16 (preferred); cast only if needed.
    w1_m = w1 if w1.dtype == jnp.bfloat16 else w1.astype(jnp.bfloat16)
    w2_m = w2 if w2.dtype == jnp.bfloat16 else w2.astype(jnp.bfloat16)
    b1f = b1.reshape(1, H).astype(jnp.float32)
    b2f = b2.reshape(1, D).astype(jnp.float32)

    grid = (M_pad // tm, H // th)
    n_mt = grid[0]

    vmem_needed = _vmem_needed(tm, th, D)
    vmem_limit = min(max(vmem_needed + (2 << 20), 16 << 20), ceiling)

    cost = pl.CostEstimate(
        flops=4 * M_pad * D * H,
        transcendentals=M_pad * H,
        bytes_accessed=(M_pad * D * 4                       # x read (f32)
                        + n_mt * (D * H * 2 + H * D * 2)    # w1/w2 re-streamed per M tile
                        + n_mt * (H * 4 + D * 4)            # biases
                        + M_pad * D * 4),                   # out write (f32)
    )

    out2d = pl.pallas_call(
        _ffn_kernel,
        out_shape=jax.ShapeDtypeStruct((M_pad, D), jnp.float32),
        grid_spec=pltpu.PrefetchScalarGridSpec(
            num_scalar_prefetch=0,
            grid=grid,
            in_specs=[
                pl.BlockSpec((tm, D), lambda i, h: (i, 0)),   # x rows (resident over h)
                pl.BlockSpec((D, th), lambda i, h: (0, h)),   # w1 hidden slab
                pl.BlockSpec((1, th), lambda i, h: (0, h)),   # b1 hidden slab
                pl.BlockSpec((th, D), lambda i, h: (h, 0)),   # w2 hidden slab
                pl.BlockSpec((1, D), lambda i, h: (0, 0)),    # b2
            ],
            out_specs=pl.BlockSpec((tm, D), lambda i, h: (i, 0)),
        ),
        compiler_params=pltpu.CompilerParams(
            dimension_semantics=("parallel", "arbitrary"),
            vmem_limit_bytes=int(vmem_limit),
        ),
        cost_estimate=cost,
    )(x2d, w1_m, b1f, w2_m, b2f)

    return out2d[:M].astype(x.dtype).reshape(B, S, D)


def _reference(x2d, w1, b1, w2, b2):
    """Reference matching the kernel's bf16-operand / f32-accumulate semantics."""
    hp = jax.lax.Precision.HIGHEST
    xb = x2d.astype(jnp.bfloat16).astype(jnp.float32)
    w1b = w1.astype(jnp.bfloat16).astype(jnp.float32)
    w2b = w2.astype(jnp.bfloat16).astype(jnp.float32)
    h = jnp.dot(xb, w1b, precision=hp) + b1.astype(jnp.float32)
    c = jnp.float32(_SQRT_2_OVER_PI)
    g = 0.5 * h * (1.0 + jnp.tanh(c * (h + 0.044715 * h**3)))
    gb = g.astype(jnp.bfloat16).astype(jnp.float32)
    return jnp.dot(gb, w2b, precision=hp) + b2.astype(jnp.float32)


if __name__ == "__main__":
    # cfg['emb_dim'] = 32  -> hidden = 128
    B, S, D = 2, 8, 32
    H = 4 * D

    key = jax.random.PRNGKey(0)
    kx, kw1, kb1, kw2, kb2 = jax.random.split(key, 5)

    x = jax.random.normal(kx, (B, S, D), dtype=jnp.float32)
    # Deterministic param init (PyTorch Linear default-like uniform scale).
    w1 = jax.random.uniform(kw1, (D, H), jnp.float32, -1.0, 1.0) / jnp.sqrt(D)
    b1 = jax.random.uniform(kb1, (1, H), jnp.float32, -1.0, 1.0) / jnp.sqrt(D)
    w2 = jax.random.uniform(kw2, (H, D), jnp.float32, -1.0, 1.0) / jnp.sqrt(H)
    b2 = jax.random.uniform(kb2, (1, D), jnp.float32, -1.0, 1.0) / jnp.sqrt(H)

    # Cast weights to bf16 ONCE (parameter-load time) so the kernel streams
    # bf16 directly from HBM with no per-call cast.
    w1_bf = w1.astype(jnp.bfloat16)
    w2_bf = w2.astype(jnp.bfloat16)

    out = feed_forward(x, w1_bf, b1, w2_bf, b2)
    out = jax.block_until_ready(out)

    ref = _reference(x.reshape(B * S, D), w1, b1, w2, b2).reshape(B, S, D)
    assert out.shape == (B, S, D)
    assert jnp.allclose(out, ref, atol=2e-2, rtol=2e-2), (
        float(jnp.max(jnp.abs(out - ref))))

    print("KERNEL_OK")
</pallas_src>

<mosaic_0001>
module attributes {stable_mosaic.version = 11 : i64} {
  func.func @_ffn_kernel(%arg0: i32, %arg1: i32, %arg2: memref<8x32xf32, #tpu.memory_space<vmem>>, %arg3: memref<32x128xbf16, #tpu.memory_space<vmem>>, %arg4: memref<1x128xf32, #tpu.memory_space<vmem>>, %arg5: memref<128x32xbf16, #tpu.memory_space<vmem>>, %arg6: memref<1x32xf32, #tpu.memory_space<vmem>>, %arg7: memref<8x32xf32, #tpu.memory_space<vmem>>) attributes {dimension_semantics = [#tpu.dimension_semantics<parallel>, #tpu.dimension_semantics<arbitrary>], iteration_bounds = array<i64: 2, 1>, scalar_prefetch = 0 : i64, scratch_operands = 0 : i64, tpu.core_type = #tpu.core_type<tc>, window_params = [{transform_indices = @transform_0, window_bounds = array<i64: 8, 32>}, {transform_indices = @transform_1, window_bounds = array<i64: 32, 128>}, {transform_indices = @transform_2, window_bounds = array<i64: 1, 128>}, {transform_indices = @transform_3, window_bounds = array<i64: 128, 32>}, {pipeline_mode = #tpu.pipeline_mode<synchronous>, transform_indices = @transform_4, window_bounds = array<i64: 1, 32>}, {transform_indices = @transform_5, window_bounds = array<i64: 8, 32>}]} {
    %c0_i32 = arith.constant 0 : i32
    %0 = arith.cmpi eq, %arg1, %c0_i32 : i32
    %1 = arith.extui %0 : i1 to i32
    %c0_i32_0 = arith.constant 0 : i32
    %2 = arith.cmpi ne, %1, %c0_i32_0 : i32
    scf.if %2 {
      %cst_19 = arith.constant 0.000000e+00 : f32
      %31 = vector.broadcast %cst_19 : f32 to vector<8x32xf32>
      %c0_20 = arith.constant 0 : index
      %c0_21 = arith.constant 0 : index
      %32 = vector.load %arg7[%c0_20, %c0_21] : memref<8x32xf32, #tpu.memory_space<vmem>>, vector<8x32xf32>
      tpu.vector_store %arg7[%c0_20, %c0_21], %31 {strides = array<i32>} : memref<8x32xf32, #tpu.memory_space<vmem>>, vector<8x32xf32>,
    } else {
    }
    %c0 = arith.constant 0 : index
    %c0_1 = arith.constant 0 : index
    %3 = vector.load %arg2[%c0, %c0_1] : memref<8x32xf32, #tpu.memory_space<vmem>>, vector<8x32xf32>
    %4 = arith.truncf %3 : vector<8x32xf32> to vector<8x32xbf16>
    %c0_2 = arith.constant 0 : index
    %c0_3 = arith.constant 0 : index
    %5 = vector.load %arg3[%c0_2, %c0_3] : memref<32x128xbf16, #tpu.memory_space<vmem>>, vector<32x128xbf16>
    %cst = arith.constant dense<0.000000e+00> : vector<8x128xf32>
    %6 = tpu.matmul %4, %5, %cst {dimension_numbers = #tpu.dot_dimension_numbers<[1], [0], [0], [1], [0, 0, 1, 1], [], []>} : vector<8x32xbf16>, vector<32x128xbf16>, vector<8x128xf32> -> vector<8x128xf32>
    %c0_4 = arith.constant 0 : index
    %c0_5 = arith.constant 0 : index
    %7 = vector.load %arg4[%c0_4, %c0_5] : memref<1x128xf32, #tpu.memory_space<vmem>>, vector<1x128xf32>
    %8 = vector.broadcast %7 : vector<1x128xf32> to vector<8x128xf32>
    %9 = arith.addf %6, %8 : vector<8x128xf32>
    %10 = arith.mulf %9, %9 : vector<8x128xf32>
    %cst_6 = arith.constant 0.0356774069 : f32
    %11 = vector.broadcast %cst_6 : f32 to vector<8x128xf32>
    %12 = arith.mulf %11, %10 : vector<8x128xf32>
    %cst_7 = arith.constant 0.797884583 : f32
    %13 = vector.broadcast %cst_7 : f32 to vector<8x128xf32>
    %14 = arith.addf %13, %12 : vector<8x128xf32>
    %15 = arith.mulf %9, %14 : vector<8x128xf32>
    %cst_8 = arith.constant 5.000000e-01 : f32
    %16 = vector.broadcast %cst_8 : f32 to vector<8x128xf32>
    %17 = arith.mulf %16, %9 : vector<8x128xf32>
    %18 = math.tanh %15 : vector<8x128xf32>
    %cst_9 = arith.constant 1.000000e+00 : f32
    %19 = vector.broadcast %cst_9 : f32 to vector<8x128xf32>
    %20 = arith.addf %19, %18 : vector<8x128xf32>
    %21 = arith.mulf %17, %20 : vector<8x128xf32>
    %c0_10 = arith.constant 0 : index
    %c0_11 = arith.constant 0 : index
    %22 = vector.load %arg7[%c0_10, %c0_11] : memref<8x32xf32, #tpu.memory_space<vmem>>, vector<8x32xf32>
    %23 = arith.truncf %21 : vector<8x128xf32> to vector<8x128xbf16>
    %c0_12 = arith.constant 0 : index
    %c0_13 = arith.constant 0 : index
    %24 = vector.load %arg5[%c0_12, %c0_13] : memref<128x32xbf16, #tpu.memory_space<vmem>>, vector<128x32xbf16>
    %cst_14 = arith.constant dense<0.000000e+00> : vector<8x32xf32>
    %25 = tpu.matmul %23, %24, %cst_14 {dimension_numbers = #tpu.dot_dimension_numbers<[1], [0], [0], [1], [0, 0, 1, 1], [], []>} : vector<8x128xbf16>, vector<128x32xbf16>, vector<8x32xf32> -> vector<8x32xf32>
    %26 = arith.addf %22, %25 : vector<8x32xf32>
    %c0_15 = arith.constant 0 : index
    %c0_16 = arith.constant 0 : index
    %27 = vector.load %arg7[%c0_15, %c0_16] : memref<8x32xf32, #tpu.memory_space<vmem>>, vector<8x32xf32>
    tpu.vector_store %arg7[%c0_15, %c0_16], %26 {strides = array<i32>} : memref<8x32xf32, #tpu.memory_space<vmem>>, vector<8x32xf32>,
    %c0_i32_17 = arith.constant 0 : i32
    %28 = arith.cmpi eq, %arg1, %c0_i32_17 : i32
    %29 = arith.extui %28 : i1 to i32
    %c0_i32_18 = arith.constant 0 : i32
    %30 = arith.cmpi ne, %29, %c0_i32_18 : i32
    scf.if %30 {
      %c0_19 = arith.constant 0 : index
      %c0_20 = arith.constant 0 : index
      %31 = vector.load %arg7[%c0_19, %c0_20] : memref<8x32xf32, #tpu.memory_space<vmem>>, vector<8x32xf32>
      %c0_21 = arith.constant 0 : index
      %c0_22 = arith.constant 0 : index
      %32 = vector.load %arg6[%c0_21, %c0_22] : memref<1x32xf32, #tpu.memory_space<vmem>>, vector<1x32xf32>
      %33 = vector.broadcast %32 : vector<1x32xf32> to vector<8x32xf32>
      %34 = arith.addf %31, %33 : vector<8x32xf32>
      %c0_23 = arith.constant 0 : index
      %c0_24 = arith.constant 0 : index
      %35 = vector.load %arg7[%c0_23, %c0_24] : memref<8x32xf32, #tpu.memory_space<vmem>>, vector<8x32xf32>
      tpu.vector_store %arg7[%c0_23, %c0_24], %34 {strides = array<i32>} : memref<8x32xf32, #tpu.memory_space<vmem>>, vector<8x32xf32>,
    } else {
    }
    return
  }
  func.func @transform_0(%arg0: i32, %arg1: i32) -> (i32, i32) {
    %c0_i32 = arith.constant 0 : i32
    %c0_i32_0 = arith.constant 0 : i32
    return %arg0, %c0_i32 : i32, i32
  }
  func.func @transform_1(%arg0: i32, %arg1: i32) -> (i32, i32) {
    %c0_i32 = arith.constant 0 : i32
    %c0_i32_0 = arith.constant 0 : i32
    return %c0_i32, %arg1 : i32, i32
  }
  func.func @transform_2(%arg0: i32, %arg1: i32) -> (i32, i32) {
    %c0_i32 = arith.constant 0 : i32
    %c0_i32_0 = arith.constant 0 : i32
    return %c0_i32, %arg1 : i32, i32
  }
  func.func @transform_3(%arg0: i32, %arg1: i32) -> (i32, i32) {
    %c0_i32 = arith.constant 0 : i32
    %c0_i32_0 = arith.constant 0 : i32
    return %arg1, %c0_i32 : i32, i32
  }
  func.func @transform_4(%arg0: i32, %arg1: i32) -> (i32, i32) {
    %c0_i32 = arith.constant 0 : i32
    %c0_i32_0 = arith.constant 0 : i32
    %c0_i32_1 = arith.constant 0 : i32
    return %c0_i32, %c0_i32_0 : i32, i32
  }
  func.func @transform_5(%arg0: i32, %arg1: i32) -> (i32, i32) {
    %c0_i32 = arith.constant 0 : i32
    %c0_i32_0 = arith.constant 0 : i32
    return %arg0, %c0_i32 : i32, i32
  }
}

</mosaic_0001>

<llo_original>
// kernel: feed_forward.1
$region0: #{feed_forward.1}
  #allocation0 [shape = 'u32[]', space=smem, size = 0x4, offset = 0x4, fixed_abs, tag = 'smem constant byte address 0x4 - core index']
  #allocation1 [shape = 'u32[144,128]{1,0:T(1,128)}', space=vmem, size = 0x12000, scoped, tag = 'internal scratch']
  %s0 = inlined_call_operand.vmem [shape: f32[16,32], index: 0, kind: input, shape index: {}]
  %s1 = inlined_call_operand.vmem [shape: bf16[32,128], index: 1, kind: input, shape index: {}]
  %s2 = inlined_call_operand.vmem [shape: f32[1,128], index: 2, kind: input, shape index: {}]
  %s3 = inlined_call_operand.vmem [shape: bf16[128,32], index: 3, kind: input, shape index: {}]
  %s4 = inlined_call_operand.vmem [shape: f32[1,32], index: 4, kind: input, shape index: {}]
  %s5 = inlined_call_operand.hbm [shape: f32[16,32], index: 5, kind: output, shape index: {}]
  %s6 = sld [smem:[#allocation0]]
  $region61: #{feed_forward.1} parent=0
    _
  %s8 = ssub.s32 1, %s6
  %s9 = scalar_select 0, %s8, %s6
  $region1: #{feed_forward.1} parent=0
    #allocation2 [shape = 'u8[8192]{0}', space=vmem, size = 0x2000, scoped, tag = 'output window, operand 0']
    #allocation3 [shape = 's32[2]{0}', space=sflag, size = 0x8, scoped, tag = 'scoped memory for feed_forward.1']
    %10 = vsyncpa [#allocation3], 0
    %s11 = scalar_lea.sflag [#allocation3], 1
    %12 = vsyncpa %s11, 0
    loop: start=0, step=1, limit=4
    $region2: #{feed_forward.1} parent=1 // loop_pre_header
      _
    $region3: #{feed_forward.1} parent=1 // loop_header
      %s14 = sphi 0, %s18
      %p15 = scmp.ge.s32.totalorder %s14, 4
      %s21 = sphi 0, %s33
      %s22 = sphi 0, %s29
      %s23 = sphi 0, %s21
      %s24 = sphi 0, %s22
      %s25 = sphi 0, %s23
      %s26 = sphi 0, %s24
      %s36 = sphi 0, %s38
      %s39 = sphi 0, %s36
      %s40 = sphi 0, %s39
      %s56 = sphi 0, %s40
      %s62 = sphi 0, %s64
      %s65 = sphi 0, %s62
      %s66 = sphi 0, %s65
      %s82 = sphi 0, %s66
      %s88 = sphi 0, %s90
      %s91 = sphi 0, %s88
      %s92 = sphi 0, %s91
      %s108 = sphi 0, %s92
      %s114 = sphi 0, %s116
      %s117 = sphi 0, %s114
      %s118 = sphi 0, %s117
      %s134 = sphi 0, %s118
      %s138 = sphi 0, %s138
      %s140 = sphi 0, %s138
      %s141 = sphi 0, %s140
      %s155 = sphi 0, %s141
      %s161 = sphi 0, %s163
      %s164 = sphi 0, %s161
      %s165 = sphi 0, %s164
      %s181 = sphi 0, %s165
    $region4: #{feed_forward.1} parent=1 // loop_header_branch
      %17 = sbr.rel (%p15) target = $region8
    $region5: #{feed_forward.1} parent=1 // loop_body
      %s19 = ssub.s32 %s14, 1
      %s20 = ssub.s32 %s14, 2
      %s27 = sadd.s32 1, %s22
      %p28 = scmp.ge.s32.totalorder %s27, 1
      %s29 = scalar_select %p28, 0, %s27
      %s30 = sadd.s32 1, %s21
      %s31 = scalar_select %p28, %s30, %s21
      %p32 = scmp.ge.s32.totalorder %s31, 2
      %s33 = scalar_select %p32, 0, %s31
      %s34 = ssub.s32 %s21, %s33
      %p35 = scmp.eq.s32.totalorder %s34, 0
      %s37 = sadd.s32 %s36, 1
      %s38 = scalar_select %p35, %s36, %s37
      %p41 = pneg %p35
      %p42 = scmp.eq.s32.totalorder %s14, 1
      %p43 = por %p41, %p42
      %p44 = scmp.ne.s32.totalorder %s36, %s39
      %p45 = scmp.eq.s32.totalorder %s14, 0
      %p46 = por %p44, %p45
      %p47 = scmp.ne.s32.totalorder %s36, %s39
      %p48 = scmp.eq.s32.totalorder %s19, 1
      %p49 = por %p47, %p48
      %p50 = scmp.ne.s32.totalorder %s39, %s40
      %p51 = scmp.eq.s32.totalorder %s19, 0
      %p52 = por %p50, %p51
      %p53 = scmp.ne.s32.totalorder %s39, %s40
      %p54 = scmp.eq.s32.totalorder %s20, 1
      %p55 = por %p53, %p54
      %p57 = scmp.ne.s32.totalorder %s40, %s56
      %p58 = scmp.eq.s32.totalorder %s20, 0
      %p59 = por %p57, %p58
      %s60 = ssub.s32 %s22, %s29
      %p61 = scmp.eq.s32.totalorder %s60, 0
      %s63 = sadd.s32 %s62, 1
      %s64 = scalar_select %p61, %s62, %s63
      %p67 = pneg %p61
      %p68 = scmp.eq.s32.totalorder %s14, 1
      %p69 = por %p67, %p68
      %p70 = scmp.ne.s32.totalorder %s62, %s65
      %p71 = scmp.eq.s32.totalorder %s14, 0
      %p72 = por %p70, %p71
      %p73 = scmp.ne.s32.totalorder %s62, %s65
      %p74 = scmp.eq.s32.totalorder %s19, 1
      %p75 = por %p73, %p74
      %p76 = scmp.ne.s32.totalorder %s65, %s66
      %p77 = scmp.eq.s32.totalorder %s19, 0
      %p78 = por %p76, %p77
      %p79 = scmp.ne.s32.totalorder %s65, %s66
      %p80 = scmp.eq.s32.totalorder %s20, 1
      %p81 = por %p79, %p80
      %p83 = scmp.ne.s32.totalorder %s66, %s82
      %p84 = scmp.eq.s32.totalorder %s20, 0
      %p85 = por %p83, %p84
      %s86 = ssub.s32 %s22, %s29
      %p87 = scmp.eq.s32.totalorder %s86, 0
      %s89 = sadd.s32 %s88, 1
      %s90 = scalar_select %p87, %s88, %s89
      %p93 = pneg %p87
      %p94 = scmp.eq.s32.totalorder %s14, 1
      %p95 = por %p93, %p94
      %p96 = scmp.ne.s32.totalorder %s88, %s91
      %p97 = scmp.eq.s32.totalorder %s14, 0
      %p98 = por %p96, %p97
      %p99 = scmp.ne.s32.totalorder %s88, %s91
      %p100 = scmp.eq.s32.totalorder %s19, 1
      %p101 = por %p99, %p100
      %p102 = scmp.ne.s32.totalorder %s91, %s92
      %p103 = scmp.eq.s32.totalorder %s19, 0
      %p104 = por %p102, %p103
      %p105 = scmp.ne.s32.totalorder %s91, %s92
      %p106 = scmp.eq.s32.totalorder %s20, 1
      %p107 = por %p105, %p106
      %p109 = scmp.ne.s32.totalorder %s92, %s108
      %p110 = scmp.eq.s32.totalorder %s20, 0
      %p111 = por %p109, %p110
      %s112 = ssub.s32 %s22, %s29
      %p113 = scmp.eq.s32.totalorder %s112, 0
      %s115 = sadd.s32 %s114, 1
      %s116 = scalar_select %p113, %s114, %s115
      %p119 = pneg %p113
      %p120 = scmp.eq.s32.totalorder %s14, 1
      %p121 = por %p119, %p120
      %p122 = scmp.ne.s32.totalorder %s114, %s117
      %p123 = scmp.eq.s32.totalorder %s14, 0
      %p124 = por %p122, %p123
      %p125 = scmp.ne.s32.totalorder %s114, %s117
      %p126 = scmp.eq.s32.totalorder %s19, 1
      %p127 = por %p125, %p126
      %p128 = scmp.ne.s32.totalorder %s117, %s118
      %p129 = scmp.eq.s32.totalorder %s19, 0
      %p130 = por %p128, %p129
      %p131 = scmp.ne.s32.totalorder %s117, %s118
      %p132 = scmp.eq.s32.totalorder %s20, 1
      %p133 = por %p131, %p132
      %p135 = scmp.ne.s32.totalorder %s118, %s134
      %p136 = scmp.eq.s32.totalorder %s20, 0
      %p137 = por %p135, %p136
      %s139 = sadd.s32 %s138, 1
      %p142 = scmp.eq.s32.totalorder %s14, 1
      %p143 = scmp.ne.s32.totalorder %s138, %s140
      %p144 = scmp.eq.s32.totalorder %s14, 0
      %p145 = por %p143, %p144
      %p146 = scmp.ne.s32.totalorder %s138, %s140
      %p147 = scmp.eq.s32.totalorder %s19, 1
      %p148 = por %p146, %p147
      %p149 = scmp.ne.s32.totalorder %s140, %s141
      %p150 = scmp.eq.s32.totalorder %s19, 0
      %p151 = por %p149, %p150
      %p152 = scmp.ne.s32.totalorder %s140, %s141
      %p153 = scmp.eq.s32.totalorder %s20, 1
      %p154 = por %p152, %p153
      %p156 = scmp.ne.s32.totalorder %s141, %s155
      %p157 = scmp.eq.s32.totalorder %s20, 0
      %p158 = por %p156, %p157
      %s159 = ssub.s32 %s21, %s33
      %p160 = scmp.eq.s32.totalorder %s159, 0
      %s162 = sadd.s32 %s161, 1
      %s163 = scalar_select %p160, %s161, %s162
      %p166 = pneg %p160
      %p167 = scmp.eq.s32.totalorder %s14, 1
      %p168 = por %p166, %p167
      %p169 = scmp.ne.s32.totalorder %s161, %s164
      %p170 = scmp.eq.s32.totalorder %s14, 0
      %p171 = por %p169, %p170
      %p172 = scmp.ne.s32.totalorder %s161, %s164
      %p173 = scmp.eq.s32.totalorder %s19, 1
      %p174 = por %p172, %p173
      %p175 = scmp.ne.s32.totalorder %s164, %s165
      %p176 = scmp.eq.s32.totalorder %s19, 0
      %p177 = por %p175, %p176
      %p178 = scmp.ne.s32.totalorder %s164, %s165
      %p179 = scmp.eq.s32.totalorder %s20, 1
      %p180 = por %p178, %p179
      %p182 = scmp.ne.s32.totalorder %s165, %s181
      %p183 = scmp.eq.s32.totalorder %s20, 0
      %p184 = por %p182, %p183
      %p185 = scmp.le.s32.totalorder 1, %s14
      %p186 = scmp.lt.s32.totalorder %s14, 3
      %p187 = pnand %p185, %p186
      %p188 = pneg %p187
      // Predicated region
      $region9: #{feed_forward.1} parent=5 // pred_check
        _
      $region10: #{feed_forward.1} parent=5 // pred_check_branch
        %190 = sbr.rel (%p187) target = $region12
      $region11: #{feed_forward.1} parent=5 // pred_region
        %s191 = ssub.s32 %s14, 1
        // Predicated region
        $region13: #{feed_forward.1} parent=11 // pred_check
          %p192 = pneg %p78
        $region14: #{feed_forward.1} parent=11 // pred_check_branch
          %194 = sbr.rel (%p192) target = $region16
        $region15: #{feed_forward.1} parent=11 // pred_region
          %p195 = scmp.lt.s32.totalorder %s24, 0
          %s196 = scalar_select %p195, %s24, 0
          %s197 = smul.addr %s196, 4
          %s198 = scalar_lea.vmem %s1, %s197
        $region16: #{feed_forward.1} parent=11 // pred_fallthru
          _
        // Predicated region
        $region17: #{feed_forward.1} parent=11 // pred_check
          %p199 = pneg %p104
        $region18: #{feed_forward.1} parent=11 // pred_check_branch
          %201 = sbr.rel (%p199) target = $region20
        $region19: #{feed_forward.1} parent=11 // pred_region
          %p202 = scmp.lt.s32.totalorder %s24, 0
          %s203 = scalar_select %p202, %s24, 0
          %s204 = scalar_lea.vmem %s2, %s203
        $region20: #{feed_forward.1} parent=11 // pred_fallthru
          _
        // Predicated region
        $region21: #{feed_forward.1} parent=11 // pred_check
          %p205 = pneg %p130
        $region22: #{feed_forward.1} parent=11 // pred_check_branch
          %207 = sbr.rel (%p205) target = $region24
        $region23: #{feed_forward.1} parent=11 // pred_region
          %s208 = smul.u32 16, %s24
          %p209 = scmp.lt.s32.totalorder %s208, 15
          %s210 = scalar_select %p209, %s208, 15
          %s211 = smul.addr %s210, 4
          %s212 = scalar_lea.vmem %s3, %s211
          %s213 = smul.u32 16, %s24
        $region24: #{feed_forward.1} parent=11 // pred_fallthru
          _
        // Predicated region
        $region25: #{feed_forward.1} parent=11 // pred_check
          %p214 = pneg %p151
        $region26: #{feed_forward.1} parent=11 // pred_check_branch
          %216 = sbr.rel (%p214) target = $region28
        $region27: #{feed_forward.1} parent=11 // pred_region
          _
        $region28: #{feed_forward.1} parent=11 // pred_fallthru
          _
      $region12: #{feed_forward.1} parent=5 // pred_fallthru
        _
      %p217 = scmp.lt.s32.totalorder %s14, 2
      // Predicated region
      $region29: #{feed_forward.1} parent=5 // pred_check
        %p218 = pneg %p217
      $region30: #{feed_forward.1} parent=5 // pred_check_branch
        %220 = sbr.rel (%p218) target = $region32
      $region31: #{feed_forward.1} parent=5 // pred_region
        // Predicated region
        $region33: #{feed_forward.1} parent=31 // pred_check
          %p221 = pneg %p46
        $region34: #{feed_forward.1} parent=31 // pred_check_branch
          %223 = sbr.rel (%p221) target = $region36
        $region35: #{feed_forward.1} parent=31 // pred_region
          %p224 = scmp.lt.s32.totalorder %s21, 1
          %s225 = scalar_select %p224, %s21, 1
          %s226 = smul.addr %s225, 8
          %s227 = scalar_lea.vmem %s0, %s226
        $region36: #{feed_forward.1} parent=31 // pred_fallthru
          _
      $region32: #{feed_forward.1} parent=5 // pred_fallthru
        _
      %p228 = scmp.le.s32.totalorder 1, %s14
      %p229 = scmp.lt.s32.totalorder %s14, 3
      %p230 = pnand %p228, %p229
      %p231 = pneg %p230
      // Predicated region
      $region37: #{feed_forward.1} parent=5 // pred_check
        _
      $region38: #{feed_forward.1} parent=5 // pred_check_branch
        %233 = sbr.rel (%p230) target = $region40
      $region39: #{feed_forward.1} parent=5 // pred_region
        %s234 = ssub.s32 %s14, 1
        %p235 = scmp.lt.s32.totalorder %s23, 1
        %s236 = scalar_select %p235, %s23, 1
        %s237 = smul.addr %s236, 8
        %s238 = scalar_lea.vmem %s0, %s237
        %p239 = pneg %p52
        %p240 = pneg %p49
        %p241 = scmp.lt.s32.totalorder %s24, 0
        %s242 = scalar_select %p241, %s24, 0
        %s243 = smul.addr %s242, 4
        %s244 = scalar_lea.vmem %s1, %s243
        %p245 = pneg %p78
        %p246 = pneg %p75
        %p247 = scmp.lt.s32.totalorder %s24, 0
        %s248 = scalar_select %p247, %s24, 0
        %s249 = scalar_lea.vmem %s2, %s248
        %p250 = pneg %p104
        %p251 = pneg %p101
        %s252 = smul.u32 16, %s24
        %p253 = scmp.lt.s32.totalorder %s252, 15
        %s254 = scalar_select %p253, %s252, 15
        %s255 = smul.addr %s254, 4
        %s256 = scalar_lea.vmem %s3, %s255
        %p257 = pneg %p130
        %p258 = pneg %p127
        %p259 = pneg %p151
        %p260 = pneg %p148
        %p261 = pneg %p177
        %p262 = pneg %p174
        %s263 = sand.u32 %s164, 1
        %s264 = scalar_lea.sflag [#allocation3], %s263
        %s265 = sand.u32 %s164, 1
        %s266 = smul.addr %s265, 8
        %s267 = scalar_lea.vmem [#allocation2], %s266
        %p268 = scmp.lt.s32.totalorder %s23, 1
        %s269 = scalar_select %p268, %s23, 1
        %s270 = smul.addr %s269, 8
        %s271 = scalar_lea.vmem %s0, %s270
        %p272 = scmp.lt.s32.totalorder %s24, 0
        %s273 = scalar_select %p272, %s24, 0
        %s274 = smul.addr %s273, 4
        %s275 = scalar_lea.vmem %s1, %s274
        %p276 = scmp.lt.s32.totalorder %s24, 0
        %s277 = scalar_select %p276, %s24, 0
        %s278 = scalar_lea.vmem %s2, %s277
        %s279 = smul.u32 16, %s24
        %p280 = scmp.lt.s32.totalorder %s279, 15
        %s281 = scalar_select %p280, %s279, 15
        %s282 = smul.addr %s281, 4
        %s283 = scalar_lea.vmem %s3, %s282
        %s284 = smul.u32 16, %s24
        %p286 = scmp.eq.s32.totalorder %s24, 0
        // Predicated region
        $region41: #{feed_forward.1} parent=39 // pred_check
          %p287 = pneg %p286
        $region42: #{feed_forward.1} parent=39 // pred_check_branch
          %289 = sbr.rel (%p287) target = $region44
        $region43: #{feed_forward.1} parent=39 // pred_region
          %vm290 = vcmask 261120
          %291 = vst.msk [vmem:[%s267] sm:$0xff] %vm290, 0.0
        $region44: #{feed_forward.1} parent=39 // pred_fallthru
          _
        %v292 = vld [vmem:[%s271] sm:$0xff]
        %v293 = vpack.c.bf16 %v292, %v292
        %v294 = vld [vmem:[%s275] sm:$0xf]
        %v295 = vld [vmem:[%s275 + $0x4] sm:$0xf]
        %v296 = vld [vmem:[%s275 + $0x8] sm:$0xf]
        %v297 = vld [vmem:[%s275 + $0xc] sm:$0xf]
        %v298 = vld [vmem:[%s278] sm:$0x1]
        %v300 = vlaneseq
        %v301 = vshrl.u32 %v300, 7
        %v302 = vsub.s32 0, %v301
        %v303 = vrot.slane %v298, %v302
        %v309 = vunpack.c.l.b16 %v294
        %v310 = vunpack.c.l.b16 %v295
        %v311 = vunpack.c.l.b16 %v296
        %v312 = vunpack.c.l.b16 %v297
        %v313 = vpack.c.b16 %v310, %v309
        %v314 = vpack.c.b16 %v312, %v311
        %vm317 = vcmask 261120
        %v319 = vsel %vm317, %v293, 0
        %321 = vmatprep.subr.bf16.mxu0 0
        %322 = vmatpush1.bf16.msra.mxu0 0
        %323 = vmatprep.subr.bf16.mxu0 0
        %324 = vmatpush1.bf16.msra.mxu0 0
        %325 = vmatprep.subr.bf16.mxu0 0
        %326 = vmatpush1.bf16.msra.mxu0 0
        %327 = vmatprep.subr.bf16.mxu0 0
        %328 = vmatpush1.bf16.msra.mxu0 0
        %329 = vmatprep.subr.bf16.mxu0 0
        %330 = vmatpush1.bf16.msra.mxu0 0
        %331 = vmatprep.subr.bf16.mxu0 0
        %332 = vmatpush1.bf16.msra.mxu0 0
        %333 = vmatprep.subr.bf16.mxu0 0
        %334 = vmatpush1.bf16.msra.mxu0 %v314
        %335 = vmatprep.subr.bf16.mxu0 0
        %336 = vmatpush1.bf16.msra.mxu0 %v313
        %337 = vmatprep.subr.bf16.mxu0 0
        %338 = vmatpush2.bf16.msra.mxu0 0
        %339 = vmatprep.subr.bf16.mxu0 0
        %340 = vmatpush2.bf16.msra.mxu0 0
        %341 = vmatprep.subr.bf16.mxu0 0
        %342 = vmatpush2.bf16.msra.mxu0 0
        %343 = vmatprep.subr.bf16.mxu0 0
        %344 = vmatpush2.bf16.msra.mxu0 0
        %345 = vmatprep.subr.bf16.mxu0 0
        %346 = vmatpush2.bf16.msra.mxu0 0
        %347 = vmatprep.subr.bf16.mxu0 0
        %348 = vmatpush2.bf16.msra.mxu0 0
        %349 = vmatprep.subr.bf16.mxu0 0
        %350 = vmatpush2.bf16.msra.mxu0 0
        %351 = vmatprep.subr.bf16.mxu0 0
        %352 = vmatpush2.bf16.msra.mxu0 0
        %353 = vmatprep.mubr.bf16.mxu0 0
        %354 = vmatmul.mubr.bf16.gmra.mxu0 %v319
        %v355 = vpop.f32.mrf.mxu0
        %v356 = vadd.f32 %v303, %v355
        %v357 = vpop.f32.mrf.mxu0
        %v358 = vpop.f32.mrf.mxu0
        %v359 = vpop.f32.mrf.mxu0
        %360 = vdwg.mxu0
        %v361 = vmul.f32 %v356, %v356
        %v362 = vmul.f32 %v361, 0.035677407
        %v363 = vadd.f32 %v362, 0.7978846
        %v364 = vmul.f32 %v356, %v363
        %v365 = vmul.f32 %v356, 0.5
        %v366 = vtanh.pop %v364
        %v367 = vadd.f32 %v366, 1.0
        %v368 = vmul.f32 %v365, %v367
        %v369 = vld [vmem:[%s267] sm:$0xff]
        %v370 = vpack.c.bf16 %v368, %v368
        %v371 = vld [vmem:[%s283] sm:$0xf]
        %v372 = vld [vmem:[%s283 + $0x4] sm:$0xf]
        %v373 = vld [vmem:[%s283 + $0x8] sm:$0xf]
        %v374 = vld [vmem:[%s283 + $0xc] sm:$0xf]
        %v375 = vld [vmem:[%s283 + $0x10] sm:$0xf]
        %v376 = vld [vmem:[%s283 + $0x14] sm:$0xf]
        %v377 = vld [vmem:[%s283 + $0x18] sm:$0xf]
        %v378 = vld [vmem:[%s283 + $0x1c] sm:$0xf]
        %v379 = vld [vmem:[%s283 + $0x20] sm:$0xf]
        %v380 = vld [vmem:[%s283 + $0x24] sm:$0xf]
        %v381 = vld [vmem:[%s283 + $0x28] sm:$0xf]
        %v382 = vld [vmem:[%s283 + $0x2c] sm:$0xf]
        %v383 = vld [vmem:[%s283 + $0x30] sm:$0xf]
        %v384 = vld [vmem:[%s283 + $0x34] sm:$0xf]
        %v385 = vld [vmem:[%s283 + $0x38] sm:$0xf]
        %v386 = vld [vmem:[%s283 + $0x3c] sm:$0xf]
        %v403 = vunpack.c.l.b16 %v371
        %v404 = vunpack.c.l.b16 %v372
        %v405 = vunpack.c.l.b16 %v373
        %v406 = vunpack.c.l.b16 %v374
        %v407 = vunpack.c.l.b16 %v375
        %v408 = vunpack.c.l.b16 %v376
        %v409 = vunpack.c.l.b16 %v377
        %v410 = vunpack.c.l.b16 %v378
        %v411 = vunpack.c.l.b16 %v379
        %v412 = vunpack.c.l.b16 %v380
        %v413 = vunpack.c.l.b16 %v381
        %v414 = vunpack.c.l.b16 %v382
        %v415 = vunpack.c.l.b16 %v383
        %v416 = vunpack.c.l.b16 %v384
        %v417 = vunpack.c.l.b16 %v385
        %v418 = vunpack.c.l.b16 %v386
        %v419 = vpack.c.b16 %v404, %v403
        %v420 = vpack.c.b16 %v406, %v405
        %v421 = vpack.c.b16 %v408, %v407
        %v422 = vpack.c.b16 %v410, %v409
        %v423 = vpack.c.b16 %v412, %v411
        %v424 = vpack.c.b16 %v414, %v413
        %v425 = vpack.c.b16 %v416, %v415
        %v426 = vpack.c.b16 %v418, %v417
        %435 = vmatprep.subr.bf16.mxu0 0
        %436 = vmatpush1.bf16.msra.mxu0 %v426
        %437 = vmatprep.subr.bf16.mxu0 0
        %438 = vmatpush1.bf16.msra.mxu0 %v425
        %439 = vmatprep.subr.bf16.mxu0 0
        %440 = vmatpush1.bf16.msra.mxu0 %v424
        %441 = vmatprep.subr.bf16.mxu0 0
        %442 = vmatpush1.bf16.msra.mxu0 %v423
        %443 = vmatprep.subr.bf16.mxu0 0
        %444 = vmatpush1.bf16.msra.mxu0 %v422
        %445 = vmatprep.subr.bf16.mxu0 0
        %446 = vmatpush1.bf16.msra.mxu0 %v421
        %447 = vmatprep.subr.bf16.mxu0 0
        %448 = vmatpush1.bf16.msra.mxu0 %v420
        %449 = vmatprep.subr.bf16.mxu0 0
        %450 = vmatpush1.bf16.msra.mxu0 %v419
        %451 = vmatprep.subr.bf16.mxu0 0
        %452 = vmatpush2.bf16.msra.mxu0 0
        %453 = vmatprep.subr.bf16.mxu0 0
        %454 = vmatpush2.bf16.msra.mxu0 0
        %455 = vmatprep.subr.bf16.mxu0 0
        %456 = vmatpush2.bf16.msra.mxu0 0
        %457 = vmatprep.subr.bf16.mxu0 0
        %458 = vmatpush2.bf16.msra.mxu0 0
        %459 = vmatprep.subr.bf16.mxu0 0
        %460 = vmatpush2.bf16.msra.mxu0 0
        %461 = vmatprep.subr.bf16.mxu0 0
        %462 = vmatpush2.bf16.msra.mxu0 0
        %463 = vmatprep.subr.bf16.mxu0 0
        %464 = vmatpush2.bf16.msra.mxu0 0
        %465 = vmatprep.subr.bf16.mxu0 0
        %466 = vmatpush2.bf16.msra.mxu0 0
        %467 = vmatprep.mubr.bf16.mxu0 0
        %468 = vmatmul.mubr.bf16.gmra.mxu0 %v370
        %v469 = vpop.f32.mrf.mxu0
        %v470 = vadd.f32 0.0, %v469
        %v471 = vpop.f32.mrf.mxu0
        %v472 = vpop.f32.mrf.mxu0
        %v473 = vpop.f32.mrf.mxu0
        %474 = vdwg.mxu0
        %v475 = vadd.f32 %v369, %v470
        %476 = vst.msk [vmem:[%s267] sm:$0xff] %vm317, %v475
        // Predicated region
        $region45: #{feed_forward.1} parent=39 // pred_check
          %p477 = pneg %p286
        $region46: #{feed_forward.1} parent=39 // pred_check_branch
          %479 = sbr.rel (%p477) target = $region48
        $region47: #{feed_forward.1} parent=39 // pred_region
          %v480 = vld [vmem:[%s267] sm:$0xff]
          %v481 = vld [vmem:[%s4] sm:$0x1]
          %v483 = vlaneseq
          %v484 = vshrl.u32 %v483, 7
          %v485 = vsub.s32 0, %v484
          %v486 = vrot.slane %v481, %v485
          %v488 = vadd.f32 %v480, %v486
          %489 = vst.msk [vmem:[%s267] sm:$0xff] %vm317, %v488
        $region48: #{feed_forward.1} parent=39 // pred_fallthru
          _
        %s490 = sand.u32 %s164, 1
        %s491 = scalar_lea.sflag [#allocation3], %s490
        %s492 = sand.u32 %s164, 1
        %s493 = smul.addr %s492, 8
        %s494 = scalar_lea.vmem [#allocation2], %s493
        // Predicated region
        $region49: #{feed_forward.1} parent=39 // pred_check
          %p495 = pneg %p174
        $region50: #{feed_forward.1} parent=39 // pred_check_branch
          %497 = sbr.rel (%p495) target = $region52
        $region51: #{feed_forward.1} parent=39 // pred_region
          %s499 = ssub.s32 128, 128
          %500 = vsyncadd %s491, %s499
          %s501 = smul.addr %s23, 128
          %s502 = scalar_lea.hbm %s5, %s501
          %s504 = sshll.u32 %s494, 4
          %s505 = int_to_ptr.vmem [resolvable:$true] %s504
          %507 = dma.vmem_to_hbm [thread:$0]  %s505, 128, %s502, %s491
        $region52: #{feed_forward.1} parent=39 // pred_fallthru
          _
      $region40: #{feed_forward.1} parent=5 // pred_fallthru
        _
      %p508 = scmp.le.s32.totalorder 2, %s14
      // Predicated region
      $region53: #{feed_forward.1} parent=5 // pred_check
        %p509 = pneg %p508
      $region54: #{feed_forward.1} parent=5 // pred_check_branch
        %511 = sbr.rel (%p509) target = $region56
      $region55: #{feed_forward.1} parent=5 // pred_region
        %s512 = ssub.s32 %s14, 2
        // Predicated region
        $region57: #{feed_forward.1} parent=55 // pred_check
          %p513 = pneg %p180
        $region58: #{feed_forward.1} parent=55 // pred_check_branch
          %515 = sbr.rel (%p513) target = $region60
        $region59: #{feed_forward.1} parent=55 // pred_region
          %s516 = sand.u32 %s165, 1
          %s517 = scalar_lea.sflag [#allocation3], %s516
          %s518 = sand.u32 %s165, 1
          %s519 = smul.addr %s518, 8
          %s520 = scalar_lea.vmem [#allocation2], %s519
          %521 = dma.done %s517, 128
        $region60: #{feed_forward.1} parent=55 // pred_fallthru
          _
      $region56: #{feed_forward.1} parent=5 // pred_fallthru
        _
    $region6: #{feed_forward.1} parent=1 // loop_footer
      %s18 = sadd.s32 1, %s14
    $region7: #{feed_forward.1} parent=1 // loop_footer_branch
      %13 = sbr.rel target = $region3
    $region8: #{feed_forward.1} parent=1 // loop_exit
      _
    %522 = vsyncpa [#allocation3], 1
    %s523 = scalar_lea.sflag [#allocation3], 1
    %524 = vsyncpa %s523, 1

</llo_original>
